<compile_context>
chip_gen: v5e
topology: v5e:2x2
jax: 0.10.0
libtpu: 0.0.40
codegen_flags: <defaults>
</compile_context>

<pallas_src>
import functools

import jax
import jax.numpy as jnp
from jax.experimental import pallas as pl
from jax.experimental.pallas import tpu as pltpu


def _bn_relu_conv_cat_kernel(x_ref, scale_ref, shift_ref, w_ref, mask_ref,
                             out_ref, *, B, C, G, H, W, conv_dtype):
    """One batch tile (B images) per grid step.

    x_ref    : (B, C, H*W)    input dtype  raw x, NCHW lane-dense
    scale_ref: (C, 1)         f32          folded BN scale (global batch stats)
    shift_ref: (C, 1)         f32          folded BN shift
    w_ref    : (9*G, C)       conv dtype   conv taps stacked over (ky, kx)
    mask_ref : (2, H*W)       f32          [w != 0, w != W-1] boundary masks
    out_ref  : (B, C+G, H*W)  out dtype    rows 0..C : x passthrough
                                           rows C..C+G : conv output
    """
    HW = H * W
    scale = scale_ref[...]                     # (C, 1) f32
    shift = shift_ref[...]
    wmat = w_ref[...]                          # (9G, C)
    mask_l = mask_ref[0:1, :]                  # zero at w == 0     (dx = -1)
    mask_r = mask_ref[1:2, :]                  # zero at w == W - 1 (dx = +1)
    zpad = jnp.zeros((9 * G, W + 1), jnp.float32)

    for b in range(B):                         # static unrolled batch tile
        xb = x_ref[b].astype(jnp.float32)                      # (C, HW) f32
        out_ref[b, 0:C, :] = xb.astype(out_ref.dtype)          # fused concat: x passthrough
        # BatchNorm (folded affine) + ReLU, all in f32 (v5e-safe elementwise).
        a = jnp.maximum(xb * scale + shift, 0.0)               # (C, HW)
        # One MXU matmul for all 9 taps: (9G, C) @ (C, HW) -> (9G, HW), f32 acc.
        m = jnp.dot(wmat, a.astype(conv_dtype),
                    preferred_element_type=jnp.float32)
        # Pad the lane axis so every shifted tap is a static in-bounds slice
        # (this also supplies the h-direction zero padding of the conv).
        mp = jnp.concatenate([zpad, m, zpad], axis=1)          # (9G, HW+2W+2)
        acc = jnp.zeros((G, HW), jnp.float32)
        t = 0
        for dy in (-1, 0, 1):
            for dx in (-1, 0, 1):
                start = (W + 1) + dy * W + dx
                slab = mp[t * G:(t + 1) * G, start:start + HW]  # (G, HW)
                if dx == -1:
                    slab = slab * mask_l       # w-boundary zero padding
                elif dx == 1:
                    slab = slab * mask_r
                acc = acc + slab
                t += 1
        out_ref[b, C:C + G, :] = acc.astype(out_ref.dtype)     # conv channels


def _pick_batch_tile(N, C, G, HW, budget_bytes=8 << 20):
    """Batch tile: amortize per-step overhead, keep >=2 grid steps (v7x has
    2 TensorCores on the parallel axis) and stay far under the v7x 64 MiB VMEM."""
    per_img = (2 * C * HW * 2              # x block, double-buffered, bf16
               + 2 * (C + G) * HW * 4      # out block, double-buffered, f32
               + C * HW * 4                # activation a (f32)
               + 2 * 9 * G * HW * 4        # matmul result + padded copy (f32)
               + G * HW * 4)               # accumulator
    bt = int(max(1, min(N, budget_bytes // max(per_img, 1))))
    while bt > 1 and (N % bt != 0 or N // bt < 2):
        bt -= 1
    return bt


def single_layer_forward(x_nchw, gamma, beta, w_oihw, *, eps=1e-5,
                         input_dtype=jnp.bfloat16, conv_dtype=None,
                         out_dtype=jnp.float32, batch_tile=None,
                         vmem_limit_bytes=48 * 1024 * 1024):
    """Forward pass of SingleLayer.  x:(N,C,H,W), gamma/beta:(C,), w:(G,C,3,3).

    Returns (N, C+G, H, W).  Note: with the default input_dtype=bf16 the x
    passthrough channels are bf16-rounded (input DMA in bf16 halves HBM bytes);
    use input_dtype=jnp.float32 for bit-tight passthrough semantics.
    """
    N, C, H, W = x_nchw.shape
    G = w_oihw.shape[0]
    HW = H * W
    if conv_dtype is None:
        conv_dtype = input_dtype

    x_f32 = x_nchw.astype(jnp.float32)

    # ---- pass 1 (plain XLA): global training-mode BN stats (biased variance),
    #      computed in f32 from the original array, folded into scale/shift.
    mean = jnp.mean(x_f32, axis=(0, 2, 3))
    var = jnp.var(x_f32, axis=(0, 2, 3))
    scale = (gamma.astype(jnp.float32) * jax.lax.rsqrt(var + eps)).reshape(C, 1)
    shift = beta.astype(jnp.float32).reshape(C, 1) - mean.reshape(C, 1) * scale

    # Lane-dense NCHW input for the kernel; bf16 halves input HBM traffic.
    x_in = x_f32.reshape(N, C, HW).astype(input_dtype)

    # Conv weight (G, C, 3, 3) -> (ky, kx, G, C) -> (9G, C), MXU operand dtype.
    w_all = jnp.transpose(w_oihw, (2, 3, 0, 1)).reshape(9 * G, C).astype(conv_dtype)

    # w-boundary masks for the dx = -1 / +1 taps (precomputed, DMA'd once).
    wcol = jnp.arange(HW, dtype=jnp.int32) % W
    masks = jnp.stack([(wcol != 0), (wcol != W - 1)]).astype(jnp.float32)

    if batch_tile is None:
        batch_tile = _pick_batch_tile(N, C, G, HW)
    assert N % batch_tile == 0, (N, batch_tile)
    B = batch_tile
    grid = (N // B,)

    kern = functools.partial(_bn_relu_conv_cat_kernel,
                             B=B, C=C, G=G, H=H, W=W, conv_dtype=conv_dtype)

    # TODO(synk): for very large H*W or C, add a spatial grid axis (haloed via
    # pl.Element indexing) and/or pipeline_mode=pl.Buffered(3) on the x spec if
    # profiling shows exposed DMA waits; per-step blocks are tiny here.
    out = pl.pallas_call(
        kern,
        out_shape=jax.ShapeDtypeStruct((N, C + G, HW), out_dtype),
        grid=grid,
        in_specs=[
            pl.BlockSpec((B, C, HW), lambda n: (n, 0, 0)),
            pl.BlockSpec((C, 1), lambda n: (0, 0)),
            pl.BlockSpec((C, 1), lambda n: (0, 0)),
            pl.BlockSpec((9 * G, C), lambda n: (0, 0)),
            pl.BlockSpec((2, HW), lambda n: (0, 0)),
        ],
        out_specs=pl.BlockSpec((B, C + G, HW), lambda n: (n, 0, 0)),
        compiler_params=pltpu.CompilerParams(
            dimension_semantics=("parallel",),
            vmem_limit_bytes=vmem_limit_bytes,   # <= ~48 MB: safe on v7x's 64 MiB
        ),
    )(x_in, scale, shift, w_all, masks)

    return out.reshape(N, C + G, H, W)


def _reference(x_nchw, gamma, beta, w_oihw, eps=1e-5):
    """Pure-JAX reference matching the PyTorch forward (training-mode BN)."""
    mean = jnp.mean(x_nchw, axis=(0, 2, 3), keepdims=True)
    var = jnp.var(x_nchw, axis=(0, 2, 3), keepdims=True)
    xn = (x_nchw - mean) * jax.lax.rsqrt(var + eps)
    a = jnp.maximum(xn * gamma.reshape(1, -1, 1, 1) + beta.reshape(1, -1, 1, 1),
                    0.0)
    conv = jax.lax.conv_general_dilated(
        a, w_oihw, window_strides=(1, 1), padding=((1, 1), (1, 1)),
        dimension_numbers=("NCHW", "OIHW", "NCHW"))
    return jnp.concatenate([x_nchw, conv], axis=1)


if __name__ == "__main__":
    N, C, H, W = 2, 4, 16, 16      # nChannels = 4
    G = 8                          # growthRate = 8

    key = jax.random.PRNGKey(0)
    kx, kg, kb, kw = jax.random.split(key, 4)
    x = jax.random.normal(kx, (N, C, H, W), dtype=jnp.float32)
    gamma = 1.0 + 0.1 * jax.random.normal(kg, (C,), dtype=jnp.float32)
    beta = 0.1 * jax.random.normal(kb, (C,), dtype=jnp.float32)
    w = jax.random.normal(kw, (G, C, 3, 3), dtype=jnp.float32) * (2.0 / (9 * C)) ** 0.5

    ref = _reference(x, gamma, beta, w)

    # f32 path: tight check of the forward semantics (exact x passthrough).
    out_f32 = jax.block_until_ready(
        single_layer_forward(x, gamma, beta, w, input_dtype=jnp.float32))
    assert out_f32.shape == (N, C + G, H, W), out_f32.shape
    err_f32 = float(jnp.max(jnp.abs(out_f32 - ref)))
    assert jnp.allclose(out_f32, ref, atol=1e-3, rtol=1e-3), err_f32

    # Default perf path: bf16 input DMA + bf16 MXU operands, f32 accumulation.
    out_bf16 = jax.block_until_ready(single_layer_forward(x, gamma, beta, w))
    err_bf16 = float(jnp.max(jnp.abs(out_bf16 - ref)))
    assert jnp.allclose(out_bf16, ref, atol=1e-1, rtol=1e-1), err_bf16

    print("KERNEL_OK")
</pallas_src>

<mosaic_0001>
module attributes {stable_mosaic.version = 11 : i64} {
  func.func @_bn_relu_conv_cat_kernel(%arg0: i32, %arg1: memref<1x4x256xf32, #tpu.memory_space<vmem>>, %arg2: memref<4x1xf32, #tpu.memory_space<vmem>>, %arg3: memref<4x1xf32, #tpu.memory_space<vmem>>, %arg4: memref<72x4xf32, #tpu.memory_space<vmem>>, %arg5: memref<2x256xf32, #tpu.memory_space<vmem>>, %arg6: memref<1x12x256xf32, #tpu.memory_space<vmem>>) attributes {dimension_semantics = [#tpu.dimension_semantics<parallel>], iteration_bounds = array<i64: 2>, scalar_prefetch = 0 : i64, scratch_operands = 0 : i64, tpu.core_type = #tpu.core_type<tc>, window_params = [{transform_indices = @transform_0, window_bounds = array<i64: 1, 4, 256>}, {pipeline_mode = #tpu.pipeline_mode<synchronous>, transform_indices = @transform_1, window_bounds = array<i64: 4, 1>}, {pipeline_mode = #tpu.pipeline_mode<synchronous>, transform_indices = @transform_2, window_bounds = array<i64: 4, 1>}, {pipeline_mode = #tpu.pipeline_mode<synchronous>, transform_indices = @transform_3, window_bounds = array<i64: 72, 4>}, {pipeline_mode = #tpu.pipeline_mode<synchronous>, transform_indices = @transform_4, window_bounds = array<i64: 2, 256>}, {transform_indices = @transform_5, window_bounds = array<i64: 1, 12, 256>}]} {
    %c0 = arith.constant 0 : index
    %c0_0 = arith.constant 0 : index
    %0 = vector.load %arg2[%c0, %c0_0] : memref<4x1xf32, #tpu.memory_space<vmem>>, vector<4x1xf32>
    %c0_1 = arith.constant 0 : index
    %c0_2 = arith.constant 0 : index
    %1 = vector.load %arg3[%c0_1, %c0_2] : memref<4x1xf32, #tpu.memory_space<vmem>>, vector<4x1xf32>
    %c0_3 = arith.constant 0 : index
    %c0_4 = arith.constant 0 : index
    %2 = vector.load %arg4[%c0_3, %c0_4] : memref<72x4xf32, #tpu.memory_space<vmem>>, vector<72x4xf32>
    %c0_5 = arith.constant 0 : index
    %c0_6 = arith.constant 0 : index
    %3 = vector.load %arg5[%c0_5, %c0_6] : memref<2x256xf32, #tpu.memory_space<vmem>>, vector<1x256xf32>
    %c1 = arith.constant 1 : index
    %c0_7 = arith.constant 0 : index
    %4 = vector.load %arg5[%c1, %c0_7] : memref<2x256xf32, #tpu.memory_space<vmem>>, vector<1x256xf32>
    %cst = arith.constant 0.000000e+00 : f32
    %5 = vector.broadcast %cst : f32 to vector<72x17xf32>
    %c0_8 = arith.constant 0 : index
    %c0_9 = arith.constant 0 : index
    %c0_10 = arith.constant 0 : index
    %6 = vector.load %arg1[%c0_8, %c0_9, %c0_10] : memref<1x4x256xf32, #tpu.memory_space<vmem>>, vector<1x4x256xf32>
    %7 = vector.shape_cast %6 : vector<1x4x256xf32> to vector<4x256xf32>
    %c0_11 = arith.constant 0 : index
    %c0_12 = arith.constant 0 : index
    %c0_13 = arith.constant 0 : index
    %8 = vector.load %arg6[%c0_11, %c0_12, %c0_13] : memref<1x12x256xf32, #tpu.memory_space<vmem>>, vector<1x4x256xf32>
    %9 = vector.shape_cast %8 : vector<1x4x256xf32> to vector<4x256xf32>
    %10 = vector.shape_cast %7 : vector<4x256xf32> to vector<1x4x256xf32>
    tpu.vector_store %arg6[%c0_11, %c0_12, %c0_13], %10 {strides = array<i32>} : memref<1x12x256xf32, #tpu.memory_space<vmem>>, vector<1x4x256xf32>,
    %11 = vector.broadcast %0 : vector<4x1xf32> to vector<4x256xf32>
    %12 = arith.mulf %7, %11 : vector<4x256xf32>
    %13 = vector.broadcast %1 : vector<4x1xf32> to vector<4x256xf32>
    %14 = arith.addf %12, %13 : vector<4x256xf32>
    %cst_14 = arith.constant 0.000000e+00 : f32
    %15 = vector.broadcast %cst_14 : f32 to vector<4x256xf32>
    %16 = arith.maximumf %14, %15 : vector<4x256xf32>
    %cst_15 = arith.constant dense<0.000000e+00> : vector<72x256xf32>
    %17 = tpu.matmul %2, %16, %cst_15 {dimension_numbers = #tpu.dot_dimension_numbers<[1], [0], [0], [1], [0, 0, 1, 1], [], []>} : vector<72x4xf32>, vector<4x256xf32>, vector<72x256xf32> -> vector<72x256xf32>
    %18 = tpu.concatenate %5, %17, %5 in 1 : vector<72x17xf32>, vector<72x256xf32>, vector<72x17xf32> -> vector<72x290xf32>
    %cst_16 = arith.constant 0.000000e+00 : f32
    %19 = vector.broadcast %cst_16 : f32 to vector<8x256xf32>
    %20 = vector.extract_strided_slice %18 {offsets = [0, 0], sizes = [8, 256], strides = [1, 1]} : vector<72x290xf32> to vector<8x256xf32>
    %21 = vector.broadcast %3 : vector<1x256xf32> to vector<8x256xf32>
    %22 = arith.mulf %20, %21 : vector<8x256xf32>
    %23 = arith.addf %19, %22 : vector<8x256xf32>
    %24 = vector.extract_strided_slice %18 {offsets = [8, 1], sizes = [8, 256], strides = [1, 1]} : vector<72x290xf32> to vector<8x256xf32>
    %25 = arith.addf %23, %24 : vector<8x256xf32>
    %26 = vector.extract_strided_slice %18 {offsets = [16, 2], sizes = [8, 256], strides = [1, 1]} : vector<72x290xf32> to vector<8x256xf32>
    %27 = vector.broadcast %4 : vector<1x256xf32> to vector<8x256xf32>
    %28 = arith.mulf %26, %27 : vector<8x256xf32>
    %29 = arith.addf %25, %28 : vector<8x256xf32>
    %30 = vector.extract_strided_slice %18 {offsets = [24, 16], sizes = [8, 256], strides = [1, 1]} : vector<72x290xf32> to vector<8x256xf32>
    %31 = vector.broadcast %3 : vector<1x256xf32> to vector<8x256xf32>
    %32 = arith.mulf %30, %31 : vector<8x256xf32>
    %33 = arith.addf %29, %32 : vector<8x256xf32>
    %34 = vector.extract_strided_slice %18 {offsets = [32, 17], sizes = [8, 256], strides = [1, 1]} : vector<72x290xf32> to vector<8x256xf32>
    %35 = arith.addf %33, %34 : vector<8x256xf32>
    %36 = vector.extract_strided_slice %18 {offsets = [40, 18], sizes = [8, 256], strides = [1, 1]} : vector<72x290xf32> to vector<8x256xf32>
    %37 = vector.broadcast %4 : vector<1x256xf32> to vector<8x256xf32>
    %38 = arith.mulf %36, %37 : vector<8x256xf32>
    %39 = arith.addf %35, %38 : vector<8x256xf32>
    %40 = vector.extract_strided_slice %18 {offsets = [48, 32], sizes = [8, 256], strides = [1, 1]} : vector<72x290xf32> to vector<8x256xf32>
    %41 = vector.broadcast %3 : vector<1x256xf32> to vector<8x256xf32>
    %42 = arith.mulf %40, %41 : vector<8x256xf32>
    %43 = arith.addf %39, %42 : vector<8x256xf32>
    %44 = vector.extract_strided_slice %18 {offsets = [56, 33], sizes = [8, 256], strides = [1, 1]} : vector<72x290xf32> to vector<8x256xf32>
    %45 = arith.addf %43, %44 : vector<8x256xf32>
    %46 = vector.extract_strided_slice %18 {offsets = [64, 34], sizes = [8, 256], strides = [1, 1]} : vector<72x290xf32> to vector<8x256xf32>
    %47 = vector.broadcast %4 : vector<1x256xf32> to vector<8x256xf32>
    %48 = arith.mulf %46, %47 : vector<8x256xf32>
    %49 = arith.addf %45, %48 : vector<8x256xf32>
    %c0_17 = arith.constant 0 : index
    %c4 = arith.constant 4 : index
    %c0_18 = arith.constant 0 : index
    %50 = vector.load %arg6[%c0_17, %c4, %c0_18] : memref<1x12x256xf32, #tpu.memory_space<vmem>>, vector<1x8x256xf32>
    %51 = vector.shape_cast %50 : vector<1x8x256xf32> to vector<8x256xf32>
    %52 = vector.shape_cast %49 : vector<8x256xf32> to vector<1x8x256xf32>
    tpu.vector_store %arg6[%c0_17, %c4, %c0_18], %52 {strides = array<i32>} : memref<1x12x256xf32, #tpu.memory_space<vmem>>, vector<1x8x256xf32>,
    return
  }
  func.func @transform_0(%arg0: i32) -> (i32, i32, i32) {
    %c0_i32 = arith.constant 0 : i32
    %c0_i32_0 = arith.constant 0 : i32
    %c0_i32_1 = arith.constant 0 : i32
    return %arg0, %c0_i32, %c0_i32_0 : i32, i32, i32
  }
  func.func @transform_1(%arg0: i32) -> (i32, i32) {
    %c0_i32 = arith.constant 0 : i32
    %c0_i32_0 = arith.constant 0 : i32
    %c0_i32_1 = arith.constant 0 : i32
    return %c0_i32, %c0_i32_0 : i32, i32
  }
  func.func @transform_2(%arg0: i32) -> (i32, i32) {
    %c0_i32 = arith.constant 0 : i32
    %c0_i32_0 = arith.constant 0 : i32
    %c0_i32_1 = arith.constant 0 : i32
    return %c0_i32, %c0_i32_0 : i32, i32
  }
  func.func @transform_3(%arg0: i32) -> (i32, i32) {
    %c0_i32 = arith.constant 0 : i32
    %c0_i32_0 = arith.constant 0 : i32
    %c0_i32_1 = arith.constant 0 : i32
    return %c0_i32, %c0_i32_0 : i32, i32
  }
  func.func @transform_4(%arg0: i32) -> (i32, i32) {
    %c0_i32 = arith.constant 0 : i32
    %c0_i32_0 = arith.constant 0 : i32
    %c0_i32_1 = arith.constant 0 : i32
    return %c0_i32, %c0_i32_0 : i32, i32
  }
  func.func @transform_5(%arg0: i32) -> (i32, i32, i32) {
    %c0_i32 = arith.constant 0 : i32
    %c0_i32_0 = arith.constant 0 : i32
    %c0_i32_1 = arith.constant 0 : i32
    return %arg0, %c0_i32, %c0_i32_0 : i32, i32, i32
  }
}

</mosaic_0001>

<llo_original>
// kernel: tpu_custom_call.1
$region0: #{tpu_custom_call.1}
  #allocation0 [shape = 'u32[]', space=smem, size = 0x4, offset = 0x4, fixed_abs, tag = 'smem constant byte address 0x4 - core index']
  #allocation1 [shape = 'u32[72,128]{1,0:T(1,128)}', space=vmem, size = 0x9000, scoped, tag = 'internal scratch']
  %s0 = inlined_call_operand.vmem [shape: f32[2,4,256], index: 0, kind: input, shape index: {}]
  %s1 = inlined_call_operand.vmem [shape: f32[4,1], index: 1, kind: input, shape index: {}]
  %s2 = inlined_call_operand.vmem [shape: f32[4,1], index: 2, kind: input, shape index: {}]
  %s3 = inlined_call_operand.vmem [shape: f32[72,4], index: 3, kind: input, shape index: {}]
  %s4 = inlined_call_operand.vmem [shape: f32[2,256], index: 4, kind: input, shape index: {}]
  %s5 = inlined_call_operand.vmem [shape: f32[2,12,256], index: 5, kind: output, shape index: {}]
  %s6 = sld [smem:[#allocation0]]
  $region53: #{tpu_custom_call.1} parent=0
    _
  %s8 = ssub.s32 1, %s6
  %s9 = scalar_select 0, %s8, %s6
  loop: start=0, step=1, limit=4
  $region2: #{tpu_custom_call.1} parent=0 // loop_pre_header
    _
  $region3: #{tpu_custom_call.1} parent=0 // loop_header
    %s11 = sphi 0, %s15
    %p12 = scmp.ge.s32.totalorder %s11, 4
    %s21 = sphi 0, %s23
    %s24 = sphi 0, %s21
    %s25 = sphi 0, %s24
    %s41 = sphi 0, %s25
    %s45 = sphi 0, %s45
    %s47 = sphi 0, %s45
    %s48 = sphi 0, %s47
    %s62 = sphi 0, %s48
    %s66 = sphi 0, %s66
    %s68 = sphi 0, %s66
    %s69 = sphi 0, %s68
    %s83 = sphi 0, %s69
    %s87 = sphi 0, %s87
    %s89 = sphi 0, %s87
    %s90 = sphi 0, %s89
    %s104 = sphi 0, %s90
    %s108 = sphi 0, %s108
    %s110 = sphi 0, %s108
    %s111 = sphi 0, %s110
    %s125 = sphi 0, %s111
    %s131 = sphi 0, %s133
    %s134 = sphi 0, %s131
    %s135 = sphi 0, %s134
    %s151 = sphi 0, %s135
  $region4: #{tpu_custom_call.1} parent=0 // loop_header_branch
    %14 = sbr.rel (%p12) target = $region8
  $region5: #{tpu_custom_call.1} parent=0 // loop_body
    %s16 = ssub.s32 %s11, 1
    %s17 = ssub.s32 %s11, 2
    %s18 = sadd.s32 %s11, 1
    %s19 = ssub.s32 %s11, %s18
    %p20 = scmp.eq.s32.totalorder %s19, 0
    %s22 = sadd.s32 %s21, 1
    %s23 = scalar_select %p20, %s21, %s22
    %p26 = pneg %p20
    %p27 = scmp.eq.s32.totalorder %s11, 1
    %p28 = por %p26, %p27
    %p29 = scmp.ne.s32.totalorder %s21, %s24
    %p30 = scmp.eq.s32.totalorder %s11, 0
    %p31 = por %p29, %p30
    %p32 = scmp.ne.s32.totalorder %s21, %s24
    %p33 = scmp.eq.s32.totalorder %s16, 1
    %p34 = por %p32, %p33
    %p35 = scmp.ne.s32.totalorder %s24, %s25
    %p36 = scmp.eq.s32.totalorder %s16, 0
    %p37 = por %p35, %p36
    %p38 = scmp.ne.s32.totalorder %s24, %s25
    %p39 = scmp.eq.s32.totalorder %s17, 1
    %p40 = por %p38, %p39
    %p42 = scmp.ne.s32.totalorder %s25, %s41
    %p43 = scmp.eq.s32.totalorder %s17, 0
    %p44 = por %p42, %p43
    %s46 = sadd.s32 %s45, 1
    %p49 = scmp.eq.s32.totalorder %s11, 1
    %p50 = scmp.ne.s32.totalorder %s45, %s47
    %p51 = scmp.eq.s32.totalorder %s11, 0
    %p52 = por %p50, %p51
    %p53 = scmp.ne.s32.totalorder %s45, %s47
    %p54 = scmp.eq.s32.totalorder %s16, 1
    %p55 = por %p53, %p54
    %p56 = scmp.ne.s32.totalorder %s47, %s48
    %p57 = scmp.eq.s32.totalorder %s16, 0
    %p58 = por %p56, %p57
    %p59 = scmp.ne.s32.totalorder %s47, %s48
    %p60 = scmp.eq.s32.totalorder %s17, 1
    %p61 = por %p59, %p60
    %p63 = scmp.ne.s32.totalorder %s48, %s62
    %p64 = scmp.eq.s32.totalorder %s17, 0
    %p65 = por %p63, %p64
    %s67 = sadd.s32 %s66, 1
    %p70 = scmp.eq.s32.totalorder %s11, 1
    %p71 = scmp.ne.s32.totalorder %s66, %s68
    %p72 = scmp.eq.s32.totalorder %s11, 0
    %p73 = por %p71, %p72
    %p74 = scmp.ne.s32.totalorder %s66, %s68
    %p75 = scmp.eq.s32.totalorder %s16, 1
    %p76 = por %p74, %p75
    %p77 = scmp.ne.s32.totalorder %s68, %s69
    %p78 = scmp.eq.s32.totalorder %s16, 0
    %p79 = por %p77, %p78
    %p80 = scmp.ne.s32.totalorder %s68, %s69
    %p81 = scmp.eq.s32.totalorder %s17, 1
    %p82 = por %p80, %p81
    %p84 = scmp.ne.s32.totalorder %s69, %s83
    %p85 = scmp.eq.s32.totalorder %s17, 0
    %p86 = por %p84, %p85
    %s88 = sadd.s32 %s87, 1
    %p91 = scmp.eq.s32.totalorder %s11, 1
    %p92 = scmp.ne.s32.totalorder %s87, %s89
    %p93 = scmp.eq.s32.totalorder %s11, 0
    %p94 = por %p92, %p93
    %p95 = scmp.ne.s32.totalorder %s87, %s89
    %p96 = scmp.eq.s32.totalorder %s16, 1
    %p97 = por %p95, %p96
    %p98 = scmp.ne.s32.totalorder %s89, %s90
    %p99 = scmp.eq.s32.totalorder %s16, 0
    %p100 = por %p98, %p99
    %p101 = scmp.ne.s32.totalorder %s89, %s90
    %p102 = scmp.eq.s32.totalorder %s17, 1
    %p103 = por %p101, %p102
    %p105 = scmp.ne.s32.totalorder %s90, %s104
    %p106 = scmp.eq.s32.totalorder %s17, 0
    %p107 = por %p105, %p106
    %s109 = sadd.s32 %s108, 1
    %p112 = scmp.eq.s32.totalorder %s11, 1
    %p113 = scmp.ne.s32.totalorder %s108, %s110
    %p114 = scmp.eq.s32.totalorder %s11, 0
    %p115 = por %p113, %p114
    %p116 = scmp.ne.s32.totalorder %s108, %s110
    %p117 = scmp.eq.s32.totalorder %s16, 1
    %p118 = por %p116, %p117
    %p119 = scmp.ne.s32.totalorder %s110, %s111
    %p120 = scmp.eq.s32.totalorder %s16, 0
    %p121 = por %p119, %p120
    %p122 = scmp.ne.s32.totalorder %s110, %s111
    %p123 = scmp.eq.s32.totalorder %s17, 1
    %p124 = por %p122, %p123
    %p126 = scmp.ne.s32.totalorder %s111, %s125
    %p127 = scmp.eq.s32.totalorder %s17, 0
    %p128 = por %p126, %p127
    %s129 = ssub.s32 %s11, %s18
    %p130 = scmp.eq.s32.totalorder %s129, 0
    %s132 = sadd.s32 %s131, 1
    %s133 = scalar_select %p130, %s131, %s132
    %p136 = pneg %p130
    %p137 = scmp.eq.s32.totalorder %s11, 1
    %p138 = por %p136, %p137
    %p139 = scmp.ne.s32.totalorder %s131, %s134
    %p140 = scmp.eq.s32.totalorder %s11, 0
    %p141 = por %p139, %p140
    %p142 = scmp.ne.s32.totalorder %s131, %s134
    %p143 = scmp.eq.s32.totalorder %s16, 1
    %p144 = por %p142, %p143
    %p145 = scmp.ne.s32.totalorder %s134, %s135
    %p146 = scmp.eq.s32.totalorder %s16, 0
    %p147 = por %p145, %p146
    %p148 = scmp.ne.s32.totalorder %s134, %s135
    %p149 = scmp.eq.s32.totalorder %s17, 1
    %p150 = por %p148, %p149
    %p152 = scmp.ne.s32.totalorder %s135, %s151
    %p153 = scmp.eq.s32.totalorder %s17, 0
    %p154 = por %p152, %p153
    %p155 = scmp.le.s32.totalorder 1, %s11
    %p156 = scmp.lt.s32.totalorder %s11, 3
    %p157 = pnand %p155, %p156
    %p158 = pneg %p157
    // Predicated region
    $region9: #{tpu_custom_call.1} parent=5 // pred_check
      _
    $region10: #{tpu_custom_call.1} parent=5 // pred_check_branch
      %160 = sbr.rel (%p157) target = $region12
    $region11: #{tpu_custom_call.1} parent=5 // pred_region
      %s161 = ssub.s32 %s11, 1
      // Predicated region
      $region13: #{tpu_custom_call.1} parent=11 // pred_check
        %p162 = pneg %p58
      $region14: #{tpu_custom_call.1} parent=11 // pred_check_branch
        %164 = sbr.rel (%p162) target = $region16
      $region15: #{tpu_custom_call.1} parent=11 // pred_region
        _
      $region16: #{tpu_custom_call.1} parent=11 // pred_fallthru
        _
      // Predicated region
      $region17: #{tpu_custom_call.1} parent=11 // pred_check
        %p165 = pneg %p79
      $region18: #{tpu_custom_call.1} parent=11 // pred_check_branch
        %167 = sbr.rel (%p165) target = $region20
      $region19: #{tpu_custom_call.1} parent=11 // pred_region
        _
      $region20: #{tpu_custom_call.1} parent=11 // pred_fallthru
        _
      // Predicated region
      $region21: #{tpu_custom_call.1} parent=11 // pred_check
        %p168 = pneg %p100
      $region22: #{tpu_custom_call.1} parent=11 // pred_check_branch
        %170 = sbr.rel (%p168) target = $region24
      $region23: #{tpu_custom_call.1} parent=11 // pred_region
        _
      $region24: #{tpu_custom_call.1} parent=11 // pred_fallthru
        _
      // Predicated region
      $region25: #{tpu_custom_call.1} parent=11 // pred_check
        %p171 = pneg %p121
      $region26: #{tpu_custom_call.1} parent=11 // pred_check_branch
        %173 = sbr.rel (%p171) target = $region28
      $region27: #{tpu_custom_call.1} parent=11 // pred_region
        _
      $region28: #{tpu_custom_call.1} parent=11 // pred_fallthru
        _
    $region12: #{tpu_custom_call.1} parent=5 // pred_fallthru
      _
    %p174 = scmp.lt.s32.totalorder %s11, 2
    // Predicated region
    $region29: #{tpu_custom_call.1} parent=5 // pred_check
      %p175 = pneg %p174
    $region30: #{tpu_custom_call.1} parent=5 // pred_check_branch
      %177 = sbr.rel (%p175) target = $region32
    $region31: #{tpu_custom_call.1} parent=5 // pred_region
      // Predicated region
      $region33: #{tpu_custom_call.1} parent=31 // pred_check
        %p178 = pneg %p31
      $region34: #{tpu_custom_call.1} parent=31 // pred_check_branch
        %180 = sbr.rel (%p178) target = $region36
      $region35: #{tpu_custom_call.1} parent=31 // pred_region
        %p181 = scmp.lt.s32.totalorder %s11, 1
        %s182 = scalar_select %p181, %s11, 1
        %s183 = smul.addr %s182, 2
        %s184 = smul.addr %s183, 4
        %s185 = scalar_lea.vmem %s0, %s184
      $region36: #{tpu_custom_call.1} parent=31 // pred_fallthru
        _
    $region32: #{tpu_custom_call.1} parent=5 // pred_fallthru
      _
    %p186 = scmp.le.s32.totalorder 1, %s11
    %p187 = scmp.lt.s32.totalorder %s11, 3
    %p188 = pnand %p186, %p187
    %p189 = pneg %p188
    // Predicated region
    $region37: #{tpu_custom_call.1} parent=5 // pred_check
      _
    $region38: #{tpu_custom_call.1} parent=5 // pred_check_branch
      %191 = sbr.rel (%p188) target = $region40
    $region39: #{tpu_custom_call.1} parent=5 // pred_region
      %s192 = ssub.s32 %s11, 1
      %p193 = scmp.lt.s32.totalorder %s16, 1
      %s194 = scalar_select %p193, %s16, 1
      %s195 = smul.addr %s194, 2
      %s196 = smul.addr %s195, 4
      %s197 = scalar_lea.vmem %s0, %s196
      %p198 = pneg %p37
      %p199 = pneg %p34
      %p200 = pneg %p58
      %p201 = pneg %p55
      %p202 = pneg %p79
      %p203 = pneg %p76
      %p204 = pneg %p100
      %p205 = pneg %p97
      %p206 = pneg %p121
      %p207 = pneg %p118
      %p208 = pneg %p147
      %p209 = pneg %p144
      %p210 = scmp.lt.s32.totalorder %s16, 1
      %s211 = scalar_select %p210, %s16, 1
      %s212 = smul.addr %s211, 4
      %s213 = smul.addr %s212, 8
      %s214 = scalar_lea.vmem %s5, %s213
      %p215 = scmp.lt.s32.totalorder %s16, 1
      %s216 = scalar_select %p215, %s16, 1
      %s217 = smul.addr %s216, 2
      %s218 = smul.addr %s217, 4
      %s219 = scalar_lea.vmem %s0, %s218
      %p220 = scmp.lt.s32.totalorder %s16, 1
      %s221 = scalar_select %p220, %s16, 1
      %s222 = smul.addr %s221, 4
      %s223 = smul.addr %s222, 8
      %s224 = scalar_lea.vmem %s5, %s223
      %v225 = vld [vmem:[%s1] sm:$0xf]
      %v226 = vld [vmem:[%s2] sm:$0xf]
      %v227 = vld [vmem:[%s3] sm:$0xff]
      %v228 = vld [vmem:[%s3 + $0x8] sm:$0xff]
      %v229 = vld [vmem:[%s3 + $0x10] sm:$0xff]
      %v230 = vld [vmem:[%s3 + $0x18] sm:$0xff]
      %v231 = vld [vmem:[%s3 + $0x20] sm:$0xff]
      %v232 = vld [vmem:[%s3 + $0x28] sm:$0xff]
      %v233 = vld [vmem:[%s3 + $0x30] sm:$0xff]
      %v234 = vld [vmem:[%s3 + $0x38] sm:$0xff]
      %v235 = vld [vmem:[%s3 + $0x40] sm:$0xff]
      %v236 = vld [vmem:[%s4] ss:$2 sm:$0x3]
      %s237 = scalar_lea.vmem %s4, 1
      %v238 = vld [vmem:[%s237] ss:$2 sm:$0x3]
      %v239 = vld [vmem:[%s219] sm:$0xff]
      %241 = vst [vmem:[#allocation1] ss:$2 sm:$0xff] %v239
      %v242 = vld.sshfl [vmem:[#allocation1] sm:$0xff pattern:$0x75316420]
      %v243 = vld.sshfl [vmem:[#allocation1 + $0x8] sm:$0xff pattern:$0x75316420]
      %246 = vst [vmem:[%s224] sm:$0xf] %v242
      %247 = vst [vmem:[%s224 + $0x8] sm:$0xf] %v243
      %249 = vset.pattern.permute.xlu0 0
      %250 = vperm.xlu0 %249, %v225
      %v251 = vpop.permute.xlu0 %250
      %v253 = vunpack.c.l.s4 839922192
      %v254 = vunpack.c.0.s8 %v253
      %v255 = vperm.slane %v251, %v254
      %v257 = vmul.f32 %v239, %v255
      %259 = vset.pattern.permute.xlu0 0
      %260 = vperm.xlu0 %259, %v226
      %v261 = vpop.permute.xlu0 %260
      %v263 = vunpack.c.l.s4 839922192
      %v264 = vunpack.c.0.s8 %v263
      %v265 = vperm.slane %v261, %v264
      %v267 = vadd.f32 %v257, %v265
      %v268 = vmax.f32 %v267, 0.0
      %270 = vst [vmem:[#allocation1] ss:$2 sm:$0xff] %v268
      %v271 = vld.sshfl [vmem:[#allocation1] sm:$0xff pattern:$0x75316420]
      %v272 = vld.sshfl [vmem:[#allocation1 + $0x8] sm:$0xff pattern:$0x75316420]
      %vm273 = vcmask 31744
      %v275 = vsel %vm273, %v227, 0
      %v278 = vsel %vm273, %v228, 0
      %v281 = vsel %vm273, %v229, 0
      %v284 = vsel %vm273, %v230, 0
      %v287 = vsel %vm273, %v231, 0
      %v290 = vsel %vm273, %v232, 0
      %v293 = vsel %vm273, %v233, 0
      %v296 = vsel %vm273, %v234, 0
      %v299 = vsel %vm273, %v235, 0
      %vm301 = vcmask 1043456
      %v302 = vsel %vm301, %v271, 0
      %v304 = vsel %vm301, %v272, 0
      %306 = vmatpush.msra.mxu0 0.0
      %307 = vmatpush.msra.mxu0 0.0
      %308 = vmatpush.msra.mxu0 0.0
      %309 = vmatpush.msra.mxu0 0.0
      %310 = vmatpush.msra.mxu0 0.0
      %311 = vmatpush.msra.mxu0 0.0
      %312 = vmatpush.msra.mxu0 0.0
      %313 = vmatpush.msra.mxu0 0.0
      %314 = vmatpush.msra.mxu0 0.0
      %315 = vmatpush.msra.mxu0 0.0
      %316 = vmatpush.msra.mxu0 0.0
      %317 = vmatpush.msra.mxu0 0.0
      %318 = vmatpush.msra.mxu0 0.0
      %319 = vmatpush.msra.mxu0 0.0
      %320 = vmatpush.msra.mxu0 0.0
      %321 = vmatpush.msra.mxu0 %v302
      %322 = vmatmul.f32.gmra.mxu0 %v275
      %v323 = vpop.f32.mrf.mxu0
      %v324 = vadd.f32 0.0, %v323
      %325 = vmatmul.f32.gmra.mxu0 %v278
      %v326 = vpop.f32.mrf.mxu0
      %v327 = vadd.f32 0.0, %v326
      %328 = vmatmul.f32.gmra.mxu0 %v281
      %v329 = vpop.f32.mrf.mxu0
      %v330 = vadd.f32 0.0, %v329
      %331 = vmatmul.f32.gmra.mxu0 %v284
      %v332 = vpop.f32.mrf.mxu0
      %v333 = vadd.f32 0.0, %v332
      %334 = vmatmul.f32.gmra.mxu0 %v287
      %v335 = vpop.f32.mrf.mxu0
      %v336 = vadd.f32 0.0, %v335
      %337 = vmatmul.f32.gmra.mxu0 %v290
      %v338 = vpop.f32.mrf.mxu0
      %v339 = vadd.f32 0.0, %v338
      %340 = vmatmul.f32.gmra.mxu0 %v293
      %v341 = vpop.f32.mrf.mxu0
      %v342 = vadd.f32 0.0, %v341
      %343 = vmatmul.f32.gmra.mxu0 %v296
      %v344 = vpop.f32.mrf.mxu0
      %v345 = vadd.f32 0.0, %v344
      %346 = vmatmul.f32.gmra.mxu0 %v299
      %v347 = vpop.f32.mrf.mxu0
      %v348 = vadd.f32 0.0, %v347
      %349 = vdwg.mxu0
      %350 = vmatpush.msra.mxu0 0.0
      %351 = vmatpush.msra.mxu0 0.0
      %352 = vmatpush.msra.mxu0 0.0
      %353 = vmatpush.msra.mxu0 0.0
      %354 = vmatpush.msra.mxu0 0.0
      %355 = vmatpush.msra.mxu0 0.0
      %356 = vmatpush.msra.mxu0 0.0
      %357 = vmatpush.msra.mxu0 0.0
      %358 = vmatpush.msra.mxu0 0.0
      %359 = vmatpush.msra.mxu0 0.0
      %360 = vmatpush.msra.mxu0 0.0
      %361 = vmatpush.msra.mxu0 0.0
      %362 = vmatpush.msra.mxu0 0.0
      %363 = vmatpush.msra.mxu0 0.0
      %364 = vmatpush.msra.mxu0 0.0
      %365 = vmatpush.msra.mxu0 %v304
      %366 = vmatmul.f32.gmra.mxu0 %v275
      %v367 = vpop.f32.mrf.mxu0
      %v368 = vadd.f32 0.0, %v367
      %369 = vmatmul.f32.gmra.mxu0 %v278
      %v370 = vpop.f32.mrf.mxu0
      %v371 = vadd.f32 0.0, %v370
      %372 = vmatmul.f32.gmra.mxu0 %v281
      %v373 = vpop.f32.mrf.mxu0
      %v374 = vadd.f32 0.0, %v373
      %375 = vmatmul.f32.gmra.mxu0 %v284
      %v376 = vpop.f32.mrf.mxu0
      %v377 = vadd.f32 0.0, %v376
      %378 = vmatmul.f32.gmra.mxu0 %v287
      %v379 = vpop.f32.mrf.mxu0
      %v380 = vadd.f32 0.0, %v379
      %381 = vmatmul.f32.gmra.mxu0 %v290
      %v382 = vpop.f32.mrf.mxu0
      %v383 = vadd.f32 0.0, %v382
      %384 = vmatmul.f32.gmra.mxu0 %v293
      %v385 = vpop.f32.mrf.mxu0
      %v386 = vadd.f32 0.0, %v385
      %387 = vmatmul.f32.gmra.mxu0 %v296
      %v388 = vpop.f32.mrf.mxu0
      %v389 = vadd.f32 0.0, %v388
      %390 = vmatmul.f32.gmra.mxu0 %v299
      %v391 = vpop.f32.mrf.mxu0
      %v392 = vadd.f32 0.0, %v391
      %393 = vdwg.mxu0
      %412 = vrot.lane.b32.xlu0 %v324, 17
      %v413 = vpop.permute.xlu0 %412
      %414 = vrot.lane.b32.xlu0 %v368, 17
      %v415 = vpop.permute.xlu0 %414
      %416 = vrot.lane.b32.xlu0 %v327, 17
      %v417 = vpop.permute.xlu0 %416
      %418 = vrot.lane.b32.xlu0 %v371, 17
      %v419 = vpop.permute.xlu0 %418
      %420 = vrot.lane.b32.xlu0 %v330, 17
      %v421 = vpop.permute.xlu0 %420
      %422 = vrot.lane.b32.xlu0 %v374, 17
      %v423 = vpop.permute.xlu0 %422
      %424 = vrot.lane.b32.xlu0 %v333, 17
      %v425 = vpop.permute.xlu0 %424
      %426 = vrot.lane.b32.xlu0 %v377, 17
      %v427 = vpop.permute.xlu0 %426
      %428 = vrot.lane.b32.xlu0 %v336, 17
      %v429 = vpop.permute.xlu0 %428
      %430 = vrot.lane.b32.xlu0 %v380, 17
      %v431 = vpop.permute.xlu0 %430
      %432 = vrot.lane.b32.xlu0 %v339, 17
      %v433 = vpop.permute.xlu0 %432
      %434 = vrot.lane.b32.xlu0 %v383, 17
      %v435 = vpop.permute.xlu0 %434
      %436 = vrot.lane.b32.xlu0 %v342, 17
      %v437 = vpop.permute.xlu0 %436
      %438 = vrot.lane.b32.xlu0 %v386, 17
      %v439 = vpop.permute.xlu0 %438
      %440 = vrot.lane.b32.xlu0 %v345, 17
      %v441 = vpop.permute.xlu0 %440
      %442 = vrot.lane.b32.xlu0 %v389, 17
      %v443 = vpop.permute.xlu0 %442
      %444 = vrot.lane.b32.xlu0 %v348, 17
      %v445 = vpop.permute.xlu0 %444
      %446 = vrot.lane.b32.xlu0 %v392, 17
      %v447 = vpop.permute.xlu0 %446
      %vm448 = vcmask 138240
      %v449 = vsel %vm448, %v413, %v415
      %v450 = vsel %vm448, %v417, %v419
      %v451 = vsel %vm448, %v421, %v423
      %v452 = vsel %vm448, %v425, %v427
      %v453 = vsel %vm448, %v429, %v431
      %v454 = vsel %vm448, %v433, %v435
      %v455 = vsel %vm448, %v437, %v439
      %v456 = vsel %vm448, %v441, %v443
      %v457 = vsel %vm448, %v445, %v447
      %v481 = vsel %vm448, 0.0, %v413
      %v482 = vsel %vm448, 0.0, %v417
      %v483 = vsel %vm448, 0.0, %v421
      %v484 = vsel %vm448, 0.0, %v425
      %v485 = vsel %vm448, 0.0, %v429
      %v486 = vsel %vm448, 0.0, %v433
      %v487 = vsel %vm448, 0.0, %v437
      %v488 = vsel %vm448, 0.0, %v441
      %v489 = vsel %vm448, 0.0, %v445
      %v490 = vsel %vm448, %v419, 0.0
      %v491 = vsel %vm448, %v423, 0.0
      %v492 = vsel %vm448, %v427, 0.0
      %v493 = vsel %vm448, %v431, 0.0
      %v494 = vsel %vm448, %v435, 0.0
      %v495 = vsel %vm448, %v439, 0.0
      %v496 = vsel %vm448, %v443, 0.0
      %v497 = vsel %vm448, %v447, 0.0
      %v499 = vperm.slane %v236, 0
      %v500 = vperm.slane %v236, 1
      %v503 = vmul.f32 %v481, %v499
      %v504 = vmul.f32 %v449, %v500
      %v505 = vadd.f32 %v503, 0.0
      %v506 = vadd.f32 %v504, 0.0
      %509 = vrot.lane.b32.xlu0 %v482, 127
      %v510 = vpop.permute.xlu0 %509
      %511 = vrot.lane.b32.xlu0 %v450, 127
      %v512 = vpop.permute.xlu0 %511
      %513 = vrot.lane.b32.xlu0 %v490, 127
      %v514 = vpop.permute.xlu0 %513
      %vm515 = vcmask 1039360
      %v516 = vsel %vm515, %v510, %v512
      %v517 = vsel %vm515, %v512, %v514
      %v520 = vadd.f32 %v505, %v516
      %v521 = vadd.f32 %v506, %v517
      %v523 = vperm.slane %v238, 0
      %v524 = vperm.slane %v238, 1
      %525 = vrot.lane.b32.xlu0 %v523, 2
      %v526 = vpop.permute.xlu0 %525
      %527 = vrot.lane.b32.xlu0 %v524, 2
      %v528 = vpop.permute.xlu0 %527
      %vm529 = vcmask 15360
      %v530 = vsel %vm529, %v526, %v528
      %v534 = vmul.f32 %v483, %v526
      %v535 = vmul.f32 %v451, %v530
      %v536 = vmul.f32 %v491, %v528
      %540 = vrot.lane.b32.xlu0 %v534, 126
      %v541 = vpop.permute.xlu0 %540
      %542 = vrot.lane.b32.xlu0 %v535, 126
      %v543 = vpop.permute.xlu0 %542
      %544 = vrot.lane.b32.xlu0 %v536, 126
      %v545 = vpop.permute.xlu0 %544
      %vm546 = vcmask 1031168
      %v547 = vsel %vm546, %v541, %v543
      %v548 = vsel %vm546, %v543, %v545
      %v551 = vadd.f32 %v520, %v547
      %v552 = vadd.f32 %v521, %v548
      %553 = vrot.lane.b32.xlu0 %v499, 16
      %v554 = vpop.permute.xlu0 %553
      %555 = vrot.lane.b32.xlu0 %v500, 16
      %v556 = vpop.permute.xlu0 %555
      %vm557 = vcmask 130048
      %v558 = vsel %vm557, %v554, %v556
      %v562 = vmul.f32 %v484, %v554
      %v563 = vmul.f32 %v452, %v558
      %v564 = vmul.f32 %v492, %v556
      %568 = vrot.lane.b32.xlu0 %v562, 112
      %v569 = vpop.permute.xlu0 %568
      %570 = vrot.lane.b32.xlu0 %v563, 112
      %v571 = vpop.permute.xlu0 %570
      %572 = vrot.lane.b32.xlu0 %v564, 112
      %v573 = vpop.permute.xlu0 %572
      %vm574 = vcmask 916480
      %v575 = vsel %vm574, %v569, %v571
      %v576 = vsel %vm574, %v571, %v573
      %v579 = vadd.f32 %v551, %v575
      %v580 = vadd.f32 %v552, %v576
      %583 = vrot.lane.b32.xlu0 %v485, 111
      %v584 = vpop.permute.xlu0 %583
      %585 = vrot.lane.b32.xlu0 %v453, 111
      %v586 = vpop.permute.xlu0 %585
      %587 = vrot.lane.b32.xlu0 %v493, 111
      %v588 = vpop.permute.xlu0 %587
      %vm589 = vcmask 908288
      %v590 = vsel %vm589, %v584, %v586
      %v591 = vsel %vm589, %v586, %v588
      %v594 = vadd.f32 %v579, %v590
      %v595 = vadd.f32 %v580, %v591
      %596 = vrot.lane.b32.xlu0 %v523, 18
      %v597 = vpop.permute.xlu0 %596
      %598 = vrot.lane.b32.xlu0 %v524, 18
      %v599 = vpop.permute.xlu0 %598
      %vm600 = vcmask 146432
      %v601 = vsel %vm600, %v597, %v599
      %v605 = vmul.f32 %v486, %v597
      %v606 = vmul.f32 %v454, %v601
      %v607 = vmul.f32 %v494, %v599
      %611 = vrot.lane.b32.xlu0 %v605, 110
      %v612 = vpop.permute.xlu0 %611
      %613 = vrot.lane.b32.xlu0 %v606, 110
      %v614 = vpop.permute.xlu0 %613
      %615 = vrot.lane.b32.xlu0 %v607, 110
      %v616 = vpop.permute.xlu0 %615
      %vm617 = vcmask 900096
      %v618 = vsel %vm617, %v612, %v614
      %v619 = vsel %vm617, %v614, %v616
      %v622 = vadd.f32 %v594, %v618
      %v623 = vadd.f32 %v595, %v619
      %624 = vrot.lane.b32.xlu0 %v499, 32
      %v625 = vpop.permute.xlu0 %624
      %626 = vrot.lane.b32.xlu0 %v500, 32
      %v627 = vpop.permute.xlu0 %626
      %vm628 = vcmask 261120
      %v629 = vsel %vm628, %v625, %v627
      %v633 = vmul.f32 %v487, %v625
      %v634 = vmul.f32 %v455, %v629
      %v635 = vmul.f32 %v495, %v627
      %639 = vrot.lane.b32.xlu0 %v633, 96
      %v640 = vpop.permute.xlu0 %639
      %641 = vrot.lane.b32.xlu0 %v634, 96
      %v642 = vpop.permute.xlu0 %641
      %643 = vrot.lane.b32.xlu0 %v635, 96
      %v644 = vpop.permute.xlu0 %643
      %vm645 = vcmask 785408
      %v646 = vsel %vm645, %v640, %v642
      %v647 = vsel %vm645, %v642, %v644
      %v650 = vadd.f32 %v622, %v646
      %v651 = vadd.f32 %v623, %v647
      %654 = vrot.lane.b32.xlu0 %v488, 95
      %v655 = vpop.permute.xlu0 %654
      %656 = vrot.lane.b32.xlu0 %v456, 95
      %v657 = vpop.permute.xlu0 %656
      %658 = vrot.lane.b32.xlu0 %v496, 95
      %v659 = vpop.permute.xlu0 %658
      %vm660 = vcmask 777216
      %v661 = vsel %vm660, %v655, %v657
      %v662 = vsel %vm660, %v657, %v659
      %v665 = vadd.f32 %v650, %v661
      %v666 = vadd.f32 %v651, %v662
      %667 = vrot.lane.b32.xlu0 %v523, 34
      %v668 = vpop.permute.xlu0 %667
      %669 = vrot.lane.b32.xlu0 %v524, 34
      %v670 = vpop.permute.xlu0 %669
      %vm671 = vcmask 277504
      %v672 = vsel %vm671, %v668, %v670
      %v676 = vmul.f32 %v489, %v668
      %v677 = vmul.f32 %v457, %v672
      %v678 = vmul.f32 %v497, %v670
      %682 = vrot.lane.b32.xlu0 %v676, 94
      %v683 = vpop.permute.xlu0 %682
      %684 = vrot.lane.b32.xlu0 %v677, 94
      %v685 = vpop.permute.xlu0 %684
      %686 = vrot.lane.b32.xlu0 %v678, 94
      %v687 = vpop.permute.xlu0 %686
      %vm688 = vcmask 769024
      %v689 = vsel %vm688, %v683, %v685
      %v690 = vsel %vm688, %v685, %v687
      %v693 = vadd.f32 %v665, %v689
      %v694 = vadd.f32 %v666, %v690
      %v697 = vrot.slane %v693, 4
      %v698 = vrot.slane %v694, 4
      %701 = vst [vmem:[%s224] sm:$0xf0] %v697
      %702 = vst [vmem:[%s224 + $0x8] sm:$0xf0] %v698
      %703 = vst [vmem:[%s224 + $0x10] sm:$0xf] %v697
      %704 = vst [vmem:[%s224 + $0x18] sm:$0xf] %v698
      %p705 = scmp.lt.s32.totalorder %s16, 1
      %s706 = scalar_select %p705, %s16, 1
      %s707 = smul.addr %s706, 4
      %s708 = smul.addr %s707, 8
      %s709 = scalar_lea.vmem %s5, %s708
      // Predicated region
      $region41: #{tpu_custom_call.1} parent=39 // pred_check
        %p710 = pneg %p144
      $region42: #{tpu_custom_call.1} parent=39 // pred_check_branch
        %712 = sbr.rel (%p710) target = $region44
      $region43: #{tpu_custom_call.1} parent=39 // pred_region
        _
      $region44: #{tpu_custom_call.1} parent=39 // pred_fallthru
        _
    $region40: #{tpu_custom_call.1} parent=5 // pred_fallthru
      _
    %p713 = scmp.le.s32.totalorder 2, %s11
    // Predicated region
    $region45: #{tpu_custom_call.1} parent=5 // pred_check
      %p714 = pneg %p713
    $region46: #{tpu_custom_call.1} parent=5 // pred_check_branch
      %716 = sbr.rel (%p714) target = $region48
    $region47: #{tpu_custom_call.1} parent=5 // pred_region
      %s717 = ssub.s32 %s11, 2
      // Predicated region
      $region49: #{tpu_custom_call.1} parent=47 // pred_check
        %p718 = pneg %p150
      $region50: #{tpu_custom_call.1} parent=47 // pred_check_branch
        %720 = sbr.rel (%p718) target = $region52
      $region51: #{tpu_custom_call.1} parent=47 // pred_region
        %p721 = scmp.lt.s32.totalorder %s17, 1
        %s722 = scalar_select %p721, %s17, 1
        %s723 = smul.addr %s722, 4
        %s724 = smul.addr %s723, 8
        %s725 = scalar_lea.vmem %s5, %s724
      $region52: #{tpu_custom_call.1} parent=47 // pred_fallthru
        _
    $region48: #{tpu_custom_call.1} parent=5 // pred_fallthru
      _
  $region6: #{tpu_custom_call.1} parent=0 // loop_footer
    %s15 = sadd.s32 1, %s11
  $region7: #{tpu_custom_call.1} parent=0 // loop_footer_branch
    %10 = sbr.rel target = $region3
  $region8: #{tpu_custom_call.1} parent=0 // loop_exit
    _

</llo_original>
